<compile_context>
chip_gen: v5e
topology: v5e:2x2
jax: 0.10.0
libtpu: 0.0.40
codegen_flags: <defaults>
</compile_context>

<pallas_src>
from functools import partial

import jax
import jax.numpy as jnp
from jax.experimental import pallas as pl
from jax.experimental.pallas import tpu as pltpu

IN_FEATURES = 10
OUT_FEATURES = 10


def linear_kernel(x_ref, w_ref, b_ref, o_ref):
    # x_ref: (Tb, IN), w_ref: (IN, OUT), b_ref: (1, OUT), o_ref: (Tb, OUT)
    y = jnp.dot(x_ref[...], w_ref[...], preferred_element_type=jnp.float32)
    o_ref[...] = (y + b_ref[...]).astype(o_ref.dtype)


def prepare_params(weight, bias):
    """One-time parameter prep: transpose weight to (IN, OUT), bias to (1, OUT).

    Done once at init (cached), so no per-call transpose HLOs.
    """
    w_t = jnp.asarray(weight).T              # (IN_FEATURES, OUT_FEATURES)
    b_r = jnp.asarray(bias).reshape(1, -1)   # (1, OUT_FEATURES)
    return w_t, b_r


@partial(jax.jit, static_argnames=("block_b",))
def dummy_model_forward(x, w_prepared, b_prepared, block_b=512):
    """x: (B, 10) f32 -> (B, 10) f32 == x @ weight.T + bias (nn.Linear semantics)."""
    B = x.shape[0]
    in_f = w_prepared.shape[0]
    out_f = w_prepared.shape[1]

    # Row tile: full batch when small, else a 512-row tile (multiple of 8,
    # ~a few KiB of VMEM per buffered block -> safe on every chip generation).
    tb = B if B <= block_b else block_b
    grid = (pl.cdiv(B, tb),)

    return pl.pallas_call(
        linear_kernel,
        out_shape=jax.ShapeDtypeStruct((B, out_f), x.dtype),
        grid=grid,
        in_specs=[
            # x: tiled over the batch axis.
            pl.BlockSpec((tb, in_f), lambda i: (i, 0)),
            # weight / bias: constant block index -> fetched once, VMEM-resident.
            pl.BlockSpec((in_f, out_f), lambda i: (0, 0)),
            pl.BlockSpec((1, out_f), lambda i: (0, 0)),
        ],
        out_specs=pl.BlockSpec((tb, out_f), lambda i: (i, 0)),
        compiler_params=pltpu.CompilerParams(
            dimension_semantics=("parallel",),  # lets v7x use both TensorCores
        ),
    )(x, w_prepared, b_prepared)


if __name__ == "__main__":
    key = jax.random.PRNGKey(0)
    kx, kw, kb, kx2 = jax.random.split(key, 4)

    # Deterministic parameter init (mimics nn.Linear's uniform(-1/sqrt(in), 1/sqrt(in))).
    bound = 1.0 / jnp.sqrt(jnp.float32(IN_FEATURES))
    weight = jax.random.uniform(kw, (OUT_FEATURES, IN_FEATURES), jnp.float32, -bound, bound)
    bias = jax.random.uniform(kb, (OUT_FEATURES,), jnp.float32, -bound, bound)

    # One-time prep (cached transposed parameters).
    w_prepared, b_prepared = prepare_params(weight, bias)

    # Small-batch run (grid of 1).
    B = 8
    x = jax.random.normal(kx, (B, IN_FEATURES), jnp.float32)
    y = dummy_model_forward(x, w_prepared, b_prepared)
    jax.block_until_ready(y)

    y_ref = x @ weight.T + bias
    assert y.shape == (B, OUT_FEATURES)
    assert jnp.allclose(y, y_ref, atol=1e-5, rtol=1e-5), "mismatch vs reference (B=8)"

    # Exercise the multi-step grid path (same kernel, small row tile).
    B2 = 32
    x2 = jax.random.normal(kx2, (B2, IN_FEATURES), jnp.float32)
    y2 = dummy_model_forward(x2, w_prepared, b_prepared, block_b=8)
    jax.block_until_ready(y2)

    y2_ref = x2 @ weight.T + bias
    assert y2.shape == (B2, OUT_FEATURES)
    assert jnp.allclose(y2, y2_ref, atol=1e-5, rtol=1e-5), "mismatch vs reference (B=32, grid)"

    print("KERNEL_OK")
</pallas_src>

<mosaic_0001>
module attributes {stable_mosaic.version = 11 : i64} {
  func.func @linear_kernel(%arg0: i32, %arg1: memref<8x10xf32, #tpu.memory_space<vmem>>, %arg2: memref<10x10xf32, #tpu.memory_space<vmem>>, %arg3: memref<1x10xf32, #tpu.memory_space<vmem>>, %arg4: memref<8x10xf32, #tpu.memory_space<vmem>>) attributes {dimension_semantics = [#tpu.dimension_semantics<parallel>], iteration_bounds = array<i64: 1>, scalar_prefetch = 0 : i64, scratch_operands = 0 : i64, tpu.core_type = #tpu.core_type<tc>, window_params = [{transform_indices = @transform_0, window_bounds = array<i64: 8, 10>}, {pipeline_mode = #tpu.pipeline_mode<synchronous>, transform_indices = @transform_1, window_bounds = array<i64: 10, 10>}, {pipeline_mode = #tpu.pipeline_mode<synchronous>, transform_indices = @transform_2, window_bounds = array<i64: 1, 10>}, {transform_indices = @transform_3, window_bounds = array<i64: 8, 10>}]} {
    %c0 = arith.constant 0 : index
    %c0_0 = arith.constant 0 : index
    %0 = vector.load %arg1[%c0, %c0_0] : memref<8x10xf32, #tpu.memory_space<vmem>>, vector<8x10xf32>
    %c0_1 = arith.constant 0 : index
    %c0_2 = arith.constant 0 : index
    %1 = vector.load %arg2[%c0_1, %c0_2] : memref<10x10xf32, #tpu.memory_space<vmem>>, vector<10x10xf32>
    %cst = arith.constant dense<0.000000e+00> : vector<8x10xf32>
    %2 = tpu.matmul %0, %1, %cst {dimension_numbers = #tpu.dot_dimension_numbers<[1], [0], [0], [1], [0, 0, 1, 1], [], []>} : vector<8x10xf32>, vector<10x10xf32>, vector<8x10xf32> -> vector<8x10xf32>
    %c0_3 = arith.constant 0 : index
    %c0_4 = arith.constant 0 : index
    %3 = vector.load %arg3[%c0_3, %c0_4] : memref<1x10xf32, #tpu.memory_space<vmem>>, vector<1x10xf32>
    %4 = vector.broadcast %3 : vector<1x10xf32> to vector<8x10xf32>
    %5 = arith.addf %2, %4 : vector<8x10xf32>
    %c0_5 = arith.constant 0 : index
    %c0_6 = arith.constant 0 : index
    %6 = vector.load %arg4[%c0_5, %c0_6] : memref<8x10xf32, #tpu.memory_space<vmem>>, vector<8x10xf32>
    tpu.vector_store %arg4[%c0_5, %c0_6], %5 {strides = array<i32>} : memref<8x10xf32, #tpu.memory_space<vmem>>, vector<8x10xf32>,
    return
  }
  func.func @transform_0(%arg0: i32) -> (i32, i32) {
    %c0_i32 = arith.constant 0 : i32
    %c0_i32_0 = arith.constant 0 : i32
    return %arg0, %c0_i32 : i32, i32
  }
  func.func @transform_1(%arg0: i32) -> (i32, i32) {
    %c0_i32 = arith.constant 0 : i32
    %c0_i32_0 = arith.constant 0 : i32
    %c0_i32_1 = arith.constant 0 : i32
    return %c0_i32, %c0_i32_0 : i32, i32
  }
  func.func @transform_2(%arg0: i32) -> (i32, i32) {
    %c0_i32 = arith.constant 0 : i32
    %c0_i32_0 = arith.constant 0 : i32
    %c0_i32_1 = arith.constant 0 : i32
    return %c0_i32, %c0_i32_0 : i32, i32
  }
  func.func @transform_3(%arg0: i32) -> (i32, i32) {
    %c0_i32 = arith.constant 0 : i32
    %c0_i32_0 = arith.constant 0 : i32
    return %arg0, %c0_i32 : i32, i32
  }
}

</mosaic_0001>

<llo_original>
// kernel: dummy_model_forward.1
$region0: #{dummy_model_forward.1}
  #allocation0 [shape = 'u32[]', space=smem, size = 0x4, offset = 0x4, fixed_abs, tag = 'smem constant byte address 0x4 - core index']
  #allocation1 [shape = 'u32[72,128]{1,0:T(1,128)}', space=vmem, size = 0x9000, scoped, tag = 'internal scratch']
  %s0 = inlined_call_operand.hbm [shape: f32[8,10], index: 0, kind: input, shape index: {}]
  %s1 = inlined_call_operand.hbm [shape: f32[10,10], index: 1, kind: input, shape index: {}]
  %s2 = inlined_call_operand.vmem [shape: f32[1,10], index: 2, kind: input, shape index: {}]
  %s3 = inlined_call_operand.hbm [shape: f32[8,10], index: 3, kind: output, shape index: {}]
  %s4 = sld [smem:[#allocation0]]
  $region30: #{dummy_model_forward.1} parent=0
    _
  %s6 = ssub.s32 1, %s4
  %s7 = scalar_select 0, %s6, %s4
  $region1: #{dummy_model_forward.1} parent=0
    #allocation2 [shape = 'u8[4096]{0}', space=vmem, size = 0x1000, scoped, tag = 'input window, operand 0, single buffered']
    #allocation3 [shape = 's32[1]{0}', space=sflag, size = 0x4, scoped, tag = 'scoped memory for dummy_model_forward.1']
    #allocation4 [shape = 's32[1]{0}', space=sflag, size = 0x4, scoped, tag = 'scoped memory for dummy_model_forward.1']
    #allocation5 [shape = 'u8[8192]{0}', space=vmem, size = 0x2000, scoped, tag = 'input window, operand 1, single buffered']
    #allocation6 [shape = 's32[1]{0}', space=sflag, size = 0x4, scoped, tag = 'scoped memory for dummy_model_forward.1']
    #allocation7 [shape = 'u8[4096]{0}', space=vmem, size = 0x1000, scoped, tag = 'output window, operand 0, single buffered']
    %8 = vsyncpa [#allocation3], 0
    %9 = vsyncpa [#allocation6], 0
    %10 = vsyncpa [#allocation4], 0
    // Predicated region
    $region2: #{dummy_model_forward.1} parent=1 // pred_check
      _
    $region3: #{dummy_model_forward.1} parent=1 // pred_check_branch
      %12 = sbr.rel (0) target = $region5
    $region4: #{dummy_model_forward.1} parent=1 // pred_region
      %14 = vsyncadd [#allocation3], 0
      %s16 = sshll.u32 %s0, 4
      %s17 = int_to_ptr.hbm [resolvable:$true] %s16
      %s18 = sshll.u32 [#allocation2], 4
      %s19 = int_to_ptr.vmem [resolvable:$true] %s18
      %21 = dma.hbm_to_vmem [thread:$0]  %s17, 128, %s19, [#allocation3]
    $region5: #{dummy_model_forward.1} parent=1 // pred_fallthru
      _
    // Predicated region
    $region6: #{dummy_model_forward.1} parent=1 // pred_check
      _
    $region7: #{dummy_model_forward.1} parent=1 // pred_check_branch
      %23 = sbr.rel (0) target = $region9
    $region8: #{dummy_model_forward.1} parent=1 // pred_region
      %25 = vsyncadd [#allocation6], 0
      %s26 = sshll.u32 %s1, 4
      %s27 = int_to_ptr.hbm [resolvable:$true] %s26
      %s28 = sshll.u32 [#allocation5], 4
      %s29 = int_to_ptr.vmem [resolvable:$true] %s28
      %34 = dma.hbm_to_vmem [thread:$0]  %s27, 256, %s29, [#allocation6], 128, 128, 8
    $region9: #{dummy_model_forward.1} parent=1 // pred_fallthru
      _
    // Predicated region
    $region10: #{dummy_model_forward.1} parent=1 // pred_check
      _
    $region11: #{dummy_model_forward.1} parent=1 // pred_check_branch
      %36 = sbr.rel (0) target = $region13
    $region12: #{dummy_model_forward.1} parent=1 // pred_region
      _
    $region13: #{dummy_model_forward.1} parent=1 // pred_fallthru
      _
    // Predicated region
    $region14: #{dummy_model_forward.1} parent=1 // pred_check
      _
    $region15: #{dummy_model_forward.1} parent=1 // pred_check_branch
      %38 = sbr.rel (0) target = $region17
    $region16: #{dummy_model_forward.1} parent=1 // pred_region
      %40 = dma.done [#allocation3], 128
    $region17: #{dummy_model_forward.1} parent=1 // pred_fallthru
      _
    // Predicated region
    $region18: #{dummy_model_forward.1} parent=1 // pred_check
      _
    $region19: #{dummy_model_forward.1} parent=1 // pred_check_branch
      %42 = sbr.rel (0) target = $region21
    $region20: #{dummy_model_forward.1} parent=1 // pred_region
      %44 = dma.done [#allocation6], 256
    $region21: #{dummy_model_forward.1} parent=1 // pred_fallthru
      _
    %v45 = vld [vmem:[#allocation2] sm:$0xff]
    %v46 = vld [vmem:[#allocation5] sm:$0xff]
    %v47 = vld [vmem:[#allocation5 + $0x8] sm:$0x3]
    %v48 = vld [vmem:[%s2] sm:$0x1]
    %v50 = vperm.slane %v48, 0
    %vm52 = vcmask 80896
    %v54 = vsel %vm52, %v45, 0
    %vm56 = vcmask 1041408
    %v58 = vsel %vm56, %v47, 0
    %60 = vmatpush.msra.mxu0 0.0
    %61 = vmatpush.msra.mxu0 0.0
    %62 = vmatpush.msra.mxu0 0.0
    %63 = vmatpush.msra.mxu0 0.0
    %64 = vmatpush.msra.mxu0 0.0
    %65 = vmatpush.msra.mxu0 0.0
    %66 = vmatpush.msra.mxu0 0.0
    %67 = vmatpush.msra.mxu0 0.0
    %68 = vmatpush.msra.mxu0 0.0
    %69 = vmatpush.msra.mxu0 0.0
    %70 = vmatpush.msra.mxu0 0.0
    %71 = vmatpush.msra.mxu0 0.0
    %72 = vmatpush.msra.mxu0 0.0
    %73 = vmatpush.msra.mxu0 0.0
    %74 = vmatpush.msra.mxu0 %v58
    %75 = vmatpush.msra.mxu0 %v46
    %76 = vmatmul.f32.gmra.mxu0 %v54
    %v77 = vpop.f32.mrf.mxu0
    %v78 = vadd.f32 %v50, %v77
    %79 = vdwg.mxu0
    %80 = vst.msk [vmem:[#allocation7] sm:$0xff] %vm52, %v78
    // Predicated region
    $region22: #{dummy_model_forward.1} parent=1 // pred_check
      _
    $region23: #{dummy_model_forward.1} parent=1 // pred_check_branch
      %82 = sbr.rel (0) target = $region25
    $region24: #{dummy_model_forward.1} parent=1 // pred_region
      %84 = vsyncadd [#allocation4], 0
      %s86 = sshll.u32 [#allocation7], 4
      %s87 = int_to_ptr.vmem [resolvable:$true] %s86
      %s88 = sshll.u32 %s3, 4
      %s89 = int_to_ptr.hbm [resolvable:$true] %s88
      %91 = dma.vmem_to_hbm [thread:$0]  %s87, 128, %s89, [#allocation4]
    $region25: #{dummy_model_forward.1} parent=1 // pred_fallthru
      _
    // Predicated region
    $region26: #{dummy_model_forward.1} parent=1 // pred_check
      _
    $region27: #{dummy_model_forward.1} parent=1 // pred_check_branch
      %93 = sbr.rel (0) target = $region29
    $region28: #{dummy_model_forward.1} parent=1 // pred_region
      %95 = dma.done [#allocation4], 128
    $region29: #{dummy_model_forward.1} parent=1 // pred_fallthru
      _
    %96 = vsyncpa [#allocation3], 1
    %97 = vsyncpa [#allocation6], 1
    %98 = vsyncpa [#allocation4], 1

</llo_original>
